<compile_context>
chip_gen: v7x
topology: tpu7x:2x2x1
jax: 0.10.0
libtpu: 0.0.40
codegen_flags: <defaults>
</compile_context>

<pallas_src>
import functools

import jax
import jax.numpy as jnp
from jax.experimental import pallas as pl
from jax.experimental.pallas import tpu as pltpu

EPS = 1e-10


# ------------------------------- kernel -------------------------------------
def layernorm_kernel(x_ref, gb_ref, o_ref, *, eps, emb_dim):
    """One (block_n, E) row tile.  gb_ref: (2, E) packed [gamma; beta] in f32."""
    x = x_ref[...].astype(jnp.float32)          # upcast (bf16 I/O supported)
    gamma = gb_ref[0:1, :]                      # static slice of packed slab
    beta = gb_ref[1:2, :]

    inv_e = 1.0 / float(emb_dim)
    # One pass over x: two *independent* XLU reductions.
    s1 = jnp.sum(x, axis=-1, keepdims=True)             # (block_n, 1)
    s2 = jnp.sum(x * x, axis=-1, keepdims=True)         # (block_n, 1)
    mean = s1 * inv_e
    # Clamp: E[x^2] - mean^2 can cancel slightly negative -> rsqrt NaN otherwise.
    var = jnp.maximum(s2 * inv_e - mean * mean, 0.0)

    inv_std = jax.lax.rsqrt(var + eps)                  # EUP slot, no VALU divide
    scale = gamma * inv_std                             # folded affine scale
    o_ref[...] = ((x - mean) * scale + beta).astype(o_ref.dtype)


# --------------------------- tile-size selection -----------------------------
def _pipeline_budget_bytes():
    """VMEM budget for the double-buffered in/out blocks, per TPU generation."""
    try:
        kind = jax.devices()[0].device_kind.lower()
    except Exception:  # pragma: no cover - defensive; fall back to a safe value
        kind = ""
    if "v7" in kind:
        return 24 << 20          # v7x: 64 MiB physical VMEM -> stay well under
    if "v5 lite" in kind or "v5e" in kind:
        return 24 << 20          # v5e: lower HBM BW, saturates with moderate tiles
    return 64 << 20              # v6e & friends: 128 MiB physical VMEM


def _choose_block_n(n, e, itemsize, budget_bytes):
    """Largest row tile s.t. 2 bufs x (x block + out block) fits the budget."""
    per_row = 4 * e * itemsize                   # 2 buffers x (in + out) per row
    max_rows = max(8, budget_bytes // per_row)
    if n <= max_rows:
        return n                                 # full dim -> always a legal block
    return max(8, (max_rows // 8) * 8)           # second-minor dim: multiple of 8


# ------------------------------- wrapper -------------------------------------
def layer_norm(x, gamma, beta, eps=EPS, block_n=None):
    """x: (B, S, E); gamma, beta: (E,).  Returns (B, S, E) in x.dtype."""
    b, s, e = x.shape
    n = b * s
    dtype = x.dtype
    itemsize = jnp.dtype(dtype).itemsize

    # Merge batch & seq into one (N, E) slab; rows are independent.
    x2d = x.reshape(n, e)
    gb = jnp.stack([gamma.astype(jnp.float32),
                    beta.astype(jnp.float32)], axis=0)           # (2, E) packed

    if block_n is None:
        block_n = _choose_block_n(n, e, itemsize, _pipeline_budget_bytes())
    block_n = min(block_n, n)

    # Pad rows so block_n divides N (padded rows are finite: var clamps to 0).
    n_pad = pl.cdiv(n, block_n) * block_n
    if n_pad != n:
        x2d = jnp.pad(x2d, ((0, n_pad - n), (0, 0)))
    grid = (n_pad // block_n,)

    # Raise the scoped-VMEM limit so the double-buffered blocks fit.
    need = 4 * block_n * e * itemsize + 2 * 2 * e * 4 + (2 << 20)
    vmem_limit = int(min(max(need, 32 << 20), 100 << 20))

    kernel = functools.partial(layernorm_kernel, eps=eps, emb_dim=e)

    out2d = pl.pallas_call(
        kernel,
        out_shape=jax.ShapeDtypeStruct((n_pad, e), dtype),
        grid=grid,
        in_specs=[
            pl.BlockSpec((block_n, e), lambda i: (i, 0)),   # activations, row-tiled
            pl.BlockSpec((2, e), lambda i: (0, 0)),         # packed gamma/beta
        ],
        out_specs=pl.BlockSpec((block_n, e), lambda i: (i, 0)),
        compiler_params=pltpu.CompilerParams(
            dimension_semantics=("parallel",),              # rows independent (v7x 2 TC)
            vmem_limit_bytes=vmem_limit,
        ),
    )(x2d, gb)

    if n_pad != n:
        out2d = out2d[:n]
    return out2d.reshape(b, s, e)


# --------------------------- pure-JAX reference ------------------------------
def layer_norm_ref(x, gamma, beta, eps=EPS):
    x = x.astype(jnp.float32)
    mean = x.mean(axis=-1, keepdims=True)
    var = ((x - mean) ** 2).mean(axis=-1, keepdims=True)
    return gamma * ((x - mean) / jnp.sqrt(var + eps)) + beta


# --------------------------------- main --------------------------------------
if __name__ == "__main__":
    key = jax.random.PRNGKey(0)
    kx, kg, kb = jax.random.split(key, 3)

    # Primary spec-sized check: (B=2, S=8, E=32), fp32.
    B, S, E = 2, 8, 32
    x = jax.random.normal(kx, (B, S, E), jnp.float32)
    gamma = jax.random.uniform(kg, (E,), jnp.float32, 0.5, 1.5)
    beta = jax.random.normal(kb, (E,), jnp.float32) * 0.1

    out = jax.block_until_ready(layer_norm(x, gamma, beta))
    ref = layer_norm_ref(x, gamma, beta)
    assert out.shape == (B, S, E)
    assert jnp.allclose(out, ref, atol=1e-4, rtol=1e-4), (
        f"max abs diff = {jnp.max(jnp.abs(out - ref))}"
    )

    # Secondary check: exercises the row-tiled grid, padding, and bf16 I/O path.
    B2, S2, E2 = 3, 40, 256
    k2, k3, k4 = jax.random.split(jax.random.PRNGKey(1), 3)
    x2 = jax.random.normal(k2, (B2, S2, E2), jnp.float32).astype(jnp.bfloat16)
    g2 = jax.random.uniform(k3, (E2,), jnp.float32, 0.5, 1.5)
    b2 = jax.random.normal(k4, (E2,), jnp.float32) * 0.1
    out2 = jax.block_until_ready(layer_norm(x2, g2, b2, block_n=64))  # grid=(2,), padded
    ref2 = layer_norm_ref(x2, g2, b2)
    assert jnp.allclose(out2.astype(jnp.float32), ref2, atol=3e-2, rtol=3e-2), (
        f"max abs diff = {jnp.max(jnp.abs(out2.astype(jnp.float32) - ref2))}"
    )

    print("KERNEL_OK")
</pallas_src>

<mosaic_0001>
module attributes {stable_mosaic.version = 11 : i64} {
  func.func @layernorm_kernel(%arg0: i32, %arg1: memref<16x32xf32, #tpu.memory_space<vmem>>, %arg2: memref<2x32xf32, #tpu.memory_space<vmem>>, %arg3: memref<16x32xf32, #tpu.memory_space<vmem>>) attributes {dimension_semantics = [#tpu.dimension_semantics<parallel>], iteration_bounds = array<i64: 1>, scalar_prefetch = 0 : i64, scratch_operands = 0 : i64, tpu.core_type = #tpu.core_type<tc>, window_params = [{transform_indices = @transform_0, window_bounds = array<i64: 16, 32>}, {pipeline_mode = #tpu.pipeline_mode<synchronous>, transform_indices = @transform_1, window_bounds = array<i64: 2, 32>}, {transform_indices = @transform_2, window_bounds = array<i64: 16, 32>}]} {
    %c0 = arith.constant 0 : index
    %c0_0 = arith.constant 0 : index
    %0 = vector.load %arg1[%c0, %c0_0] : memref<16x32xf32, #tpu.memory_space<vmem>>, vector<16x32xf32>
    %c0_1 = arith.constant 0 : index
    %c0_2 = arith.constant 0 : index
    %1 = vector.load %arg2[%c0_1, %c0_2] : memref<2x32xf32, #tpu.memory_space<vmem>>, vector<1x32xf32>
    %c1 = arith.constant 1 : index
    %c0_3 = arith.constant 0 : index
    %2 = vector.load %arg2[%c1, %c0_3] : memref<2x32xf32, #tpu.memory_space<vmem>>, vector<1x32xf32>
    %cst = arith.constant dense<0.000000e+00> : vector<16xf32>
    %3 = vector.multi_reduction <add>, %0, %cst [1] : vector<16x32xf32> to vector<16xf32>
    %4 = vector.shape_cast %3 : vector<16xf32> to vector<16x1xf32>
    %5 = arith.mulf %0, %0 : vector<16x32xf32>
    %cst_4 = arith.constant dense<0.000000e+00> : vector<16xf32>
    %6 = vector.multi_reduction <add>, %5, %cst_4 [1] : vector<16x32xf32> to vector<16xf32>
    %7 = vector.shape_cast %6 : vector<16xf32> to vector<16x1xf32>
    %cst_5 = arith.constant 3.125000e-02 : f32
    %8 = vector.broadcast %cst_5 : f32 to vector<16x1xf32>
    %9 = arith.mulf %4, %8 : vector<16x1xf32>
    %cst_6 = arith.constant 3.125000e-02 : f32
    %10 = vector.broadcast %cst_6 : f32 to vector<16x1xf32>
    %11 = arith.mulf %7, %10 : vector<16x1xf32>
    %12 = arith.mulf %9, %9 : vector<16x1xf32>
    %13 = arith.subf %11, %12 : vector<16x1xf32>
    %cst_7 = arith.constant 0.000000e+00 : f32
    %14 = vector.broadcast %cst_7 : f32 to vector<16x1xf32>
    %15 = arith.maximumf %13, %14 : vector<16x1xf32>
    %cst_8 = arith.constant 1.000000e-10 : f32
    %16 = vector.broadcast %cst_8 : f32 to vector<16x1xf32>
    %17 = arith.addf %15, %16 : vector<16x1xf32>
    %18 = math.rsqrt %17 : vector<16x1xf32>
    %19 = vector.broadcast %1 : vector<1x32xf32> to vector<16x32xf32>
    %20 = vector.broadcast %18 : vector<16x1xf32> to vector<16x32xf32>
    %21 = arith.mulf %19, %20 : vector<16x32xf32>
    %22 = vector.broadcast %9 : vector<16x1xf32> to vector<16x32xf32>
    %23 = arith.subf %0, %22 : vector<16x32xf32>
    %24 = arith.mulf %23, %21 : vector<16x32xf32>
    %25 = vector.broadcast %2 : vector<1x32xf32> to vector<16x32xf32>
    %26 = arith.addf %24, %25 : vector<16x32xf32>
    %c0_9 = arith.constant 0 : index
    %c0_10 = arith.constant 0 : index
    %27 = vector.load %arg3[%c0_9, %c0_10] : memref<16x32xf32, #tpu.memory_space<vmem>>, vector<16x32xf32>
    tpu.vector_store %arg3[%c0_9, %c0_10], %26 {strides = array<i32>} : memref<16x32xf32, #tpu.memory_space<vmem>>, vector<16x32xf32>,
    return
  }
  func.func @transform_0(%arg0: i32) -> (i32, i32) {
    %c0_i32 = arith.constant 0 : i32
    %c0_i32_0 = arith.constant 0 : i32
    return %arg0, %c0_i32 : i32, i32
  }
  func.func @transform_1(%arg0: i32) -> (i32, i32) {
    %c0_i32 = arith.constant 0 : i32
    %c0_i32_0 = arith.constant 0 : i32
    %c0_i32_1 = arith.constant 0 : i32
    return %c0_i32, %c0_i32_0 : i32, i32
  }
  func.func @transform_2(%arg0: i32) -> (i32, i32) {
    %c0_i32 = arith.constant 0 : i32
    %c0_i32_0 = arith.constant 0 : i32
    return %arg0, %c0_i32 : i32, i32
  }
}

</mosaic_0001>

<llo_original>
// kernel: tpu_custom_call.1
$region0: #{tpu_custom_call.1}
  #allocation0 [shape = 'u32[]', space=smem, size = 0x4, offset = 0x4, fixed_abs, tag = 'smem constant byte address 0x4 - core index']
  #allocation1 [shape = 'u32[144,128]{1,0:T(1,128)}', space=vmem, size = 0x12000, scoped, tag = 'internal scratch']
  %s0 = inlined_call_operand.hbm [shape: f32[16,32], index: 0, kind: input, shape index: {}]
  %s1 = inlined_call_operand.vmem [shape: f32[2,32], index: 1, kind: input, shape index: {}]
  %s2 = inlined_call_operand.hbm [shape: f32[16,32], index: 2, kind: output, shape index: {}]
  %s3 = sld [smem:[#allocation0]]
  $region22: #{tpu_custom_call.1} parent=0
    _
  %s5 = ssub.s32 1, %s3
  %s6 = scalar_select 0, %s5, %s3
  $region1: #{tpu_custom_call.1} parent=0
    #allocation2 [shape = 'u8[8192]{0}', space=vmem, size = 0x2000, scoped, tag = 'input window, operand 0, single buffered']
    #allocation3 [shape = 's32[1]{0}', space=sflag, size = 0x4, scoped, tag = 'scoped memory for tpu_custom_call.1']
    #allocation4 [shape = 's32[1]{0}', space=sflag, size = 0x4, scoped, tag = 'scoped memory for tpu_custom_call.1']
    #allocation5 [shape = 'u8[8192]{0}', space=vmem, size = 0x2000, scoped, tag = 'output window, operand 0, single buffered']
    %7 = vsyncpa [#allocation3], 0
    %8 = vsyncpa [#allocation4], 0
    // Predicated region
    $region2: #{tpu_custom_call.1} parent=1 // pred_check
      _
    $region3: #{tpu_custom_call.1} parent=1 // pred_check_branch
      %10 = sbr.rel (0) target = $region5
    $region4: #{tpu_custom_call.1} parent=1 // pred_region
      %s12 = ssub.s32 256, 256
      %13 = vsyncadd [#allocation3], %s12
      %s14 = sshll.u32 [#allocation2], 4
      %s15 = int_to_ptr.vmem [resolvable:$true] %s14
      %20 = dma.hbm_to_vmem [thread:$0]  %s0, 256, %s15, [#allocation3], 128, 128, 8
    $region5: #{tpu_custom_call.1} parent=1 // pred_fallthru
      _
    // Predicated region
    $region6: #{tpu_custom_call.1} parent=1 // pred_check
      _
    $region7: #{tpu_custom_call.1} parent=1 // pred_check_branch
      %22 = sbr.rel (0) target = $region9
    $region8: #{tpu_custom_call.1} parent=1 // pred_region
      _
    $region9: #{tpu_custom_call.1} parent=1 // pred_fallthru
      _
    // Predicated region
    $region10: #{tpu_custom_call.1} parent=1 // pred_check
      _
    $region11: #{tpu_custom_call.1} parent=1 // pred_check_branch
      %24 = sbr.rel (0) target = $region13
    $region12: #{tpu_custom_call.1} parent=1 // pred_region
      %25 = dma.done [#allocation3], 256
    $region13: #{tpu_custom_call.1} parent=1 // pred_fallthru
      _
    %v26 = vld [vmem:[#allocation2] sm:$0xff]
    %v27 = vld [vmem:[#allocation2 + $0x8] sm:$0xff]
    %v28 = vld [vmem:[%s1] sm:$0x1]
    %v29 = vld [vmem:[%s1 + $0x1] sm:$0x1]
    %vm30 = vcmask 261120
    %v31 = vsel %vm30, %v26, 0.0
    %32 = vadd.xlane.f32.xlu0 %v31
    %v33 = vpop.xlane.xlu0 %32
    %v34 = vsel %vm30, %v27, 0.0
    %35 = vadd.xlane.f32.xlu0 %v34
    %v36 = vpop.xlane.xlu0 %35
    %v37 = vmul.f32 %v26, %v26
    %v38 = vmul.f32 %v27, %v27
    %v39 = vsel %vm30, %v37, 0.0
    %40 = vadd.xlane.f32.xlu0 %v39
    %v41 = vpop.xlane.xlu0 %40
    %v42 = vsel %vm30, %v38, 0.0
    %43 = vadd.xlane.f32.xlu0 %v42
    %v44 = vpop.xlane.xlu0 %43
    %v45 = vmul.f32 %v33, 0.03125
    %v46 = vmul.f32 %v36, 0.03125
    %v47 = vmul.f32 %v41, 0.03125
    %v48 = vmul.f32 %v44, 0.03125
    %v49 = vmul.f32 %v45, %v45
    %v50 = vmul.f32 %v46, %v46
    %v51 = vsub.f32 %v47, %v49
    %v52 = vsub.f32 %v48, %v50
    %v53 = vmax.f32 %v51, 0.0
    %v54 = vmax.f32 %v52, 0.0
    %v55 = vadd.f32 %v53, 1e-10
    %v56 = vadd.f32 %v54, 1e-10
    %v57 = vrsqrt.pop %v55
    %v58 = vrsqrt.pop %v56
    %v59 = vlaneseq
    %v60 = vshrl.u32 %v59, 7
    %v61 = vsub.s32 0, %v60
    %v62 = vrot.slane %v28, %v61
    %v63 = vmul.f32 %v62, %v57
    %v64 = vmul.f32 %v62, %v58
    %v65 = vsub.f32 %v26, %v45
    %v66 = vsub.f32 %v27, %v46
    %v67 = vmul.f32 %v65, %v63
    %v68 = vmul.f32 %v66, %v64
    %v69 = vlaneseq
    %v70 = vshrl.u32 %v69, 7
    %v71 = vsub.s32 0, %v70
    %v72 = vrot.slane %v29, %v71
    %v73 = vadd.f32 %v67, %v72
    %v74 = vadd.f32 %v68, %v72
    %75 = vst.msk [vmem:[#allocation5] sm:$0xff] %vm30, %v73
    %76 = vst.msk [vmem:[#allocation5 + $0x8] sm:$0xff] %vm30, %v74
    // Predicated region
    $region14: #{tpu_custom_call.1} parent=1 // pred_check
      _
    $region15: #{tpu_custom_call.1} parent=1 // pred_check_branch
      %78 = sbr.rel (0) target = $region17
    $region16: #{tpu_custom_call.1} parent=1 // pred_region
      %s80 = ssub.s32 256, 256
      %81 = vsyncadd [#allocation4], %s80
      %s82 = sshll.u32 [#allocation5], 4
      %s83 = int_to_ptr.vmem [resolvable:$true] %s82
      %88 = dma.vmem_to_hbm [thread:$0]  %s83, 256, %s2, [#allocation4], 128, 128, 8
    $region17: #{tpu_custom_call.1} parent=1 // pred_fallthru
      _
    // Predicated region
    $region18: #{tpu_custom_call.1} parent=1 // pred_check
      _
    $region19: #{tpu_custom_call.1} parent=1 // pred_check_branch
      %90 = sbr.rel (0) target = $region21
    $region20: #{tpu_custom_call.1} parent=1 // pred_region
      %91 = dma.done [#allocation4], 256
    $region21: #{tpu_custom_call.1} parent=1 // pred_fallthru
      _
    %92 = vsyncpa [#allocation3], 1
    %93 = vsyncpa [#allocation4], 1

</llo_original>
